<compile_context>
chip_gen: v7x
topology: tpu7x:2x2x1
jax: 0.10.0
libtpu: 0.0.40
codegen_flags: <defaults>
</compile_context>

<pallas_src>
import functools

import jax
import jax.numpy as jnp
from jax.experimental import pallas as pl
from jax.experimental.pallas import tpu as pltpu


def _dropout_bits_kernel(before_ref, after_ref, bits_ref, out_ref, *,
                         threshold, scale):
    """Host-supplied uint16 random bits.  threshold/scale are Python scalars."""
    bits = bits_ref[...].astype(jnp.int32)          # zero-extend u16 -> i32
    keep = bits >= threshold                        # P(keep) = 1 - threshold/65536
    after_f32 = after_ref[...].astype(jnp.float32)  # f32 math (v5e-safe)
    dropped = jnp.where(keep, after_f32 * scale, 0.0)
    out_ref[...] = (before_ref[...].astype(jnp.float32) + dropped).astype(
        out_ref.dtype)


def _dropout_prng_kernel(seed_ref, before_ref, after_ref, out_ref, *,
                         threshold, scale):
    """In-kernel hardware PRNG path (no bits stream through HBM)."""
    # Salt the seed per grid block so every block draws an independent stream.
    pltpu.prng_seed(seed_ref[0] + pl.program_id(0))
    raw = pltpu.prng_random_bits(before_ref.shape)
    bits = pltpu.bitcast(raw, jnp.int32) & 0x7FFFFFFF   # non-negative 31-bit
    keep = bits >= threshold                             # P(keep) = 1 - thr/2^31
    after_f32 = after_ref[...].astype(jnp.float32)
    dropped = jnp.where(keep, after_f32 * scale, 0.0)
    out_ref[...] = (before_ref[...].astype(jnp.float32) + dropped).astype(
        out_ref.dtype)


def _choose_lane_width(total: int):
    """Largest 128-multiple lane width; returns (lane, padded_total)."""
    for cand in (1024, 512, 256, 128):
        if total % cand == 0:
            return cand, total
    lane = 128
    padded_total = ((total + lane - 1) // lane) * lane   # pad < 128 elements
    return lane, padded_total


def _choose_tile_rows(rows: int, lane: int, itemsize: int) -> int:
    """Largest power-of-two row tile (>=8) with block <= ~2 MiB per array."""
    max_block_bytes = 2 * 1024 * 1024
    max_rows = max(8, max_block_bytes // (lane * max(itemsize, 4)))
    if rows <= 8:
        return rows          # block == full array on the row axis
    t = 8
    while (t * 2) <= min(max_rows, rows):
        t *= 2
    return t


def residual_block(before, after, *, residual_dropout: float = 0.1,
                   training: bool = True, seed: int = 0,
                   use_device_prng: bool = False):
    """before, after: identical shape/dtype; returns the same shape/dtype."""
    assert before.shape == after.shape and before.dtype == after.dtype

    # Eval mode / p == 0: identity dropout.  Plain jnp add — XLA fuses it.
    if (not training) or residual_dropout <= 0.0:
        return before + after
    if residual_dropout >= 1.0:
        # Everything dropped: dropout(after) == 0.
        return before

    orig_shape = before.shape
    total = int(before.size)
    p = float(residual_dropout)
    scale = 1.0 / (1.0 - p)

    lane, padded_total = _choose_lane_width(total)
    pad = padded_total - total
    rows = padded_total // lane

    b_flat = before.reshape(-1)
    a_flat = after.reshape(-1)
    if pad:
        b_flat = jnp.pad(b_flat, (0, pad))
        a_flat = jnp.pad(a_flat, (0, pad))
    b2 = b_flat.reshape(rows, lane)
    a2 = a_flat.reshape(rows, lane)

    tile_m = _choose_tile_rows(rows, lane, before.dtype.itemsize)
    grid = (pl.cdiv(rows, tile_m),)
    compiler_params = pltpu.CompilerParams(
        dimension_semantics=("parallel",))   # shard rows across v7x's 2 TCs

    if use_device_prng:
        # No random-bits HBM stream: 3 streams total (before, after, out).
        threshold = min(int(round(p * 2.0 ** 31)), 2 ** 31 - 1)
        kernel = functools.partial(_dropout_prng_kernel,
                                   threshold=threshold, scale=scale)
        grid_spec = pltpu.PrefetchScalarGridSpec(
            num_scalar_prefetch=1, grid=grid,
            in_specs=[pl.BlockSpec((tile_m, lane), lambda i, s: (i, 0)),
                      pl.BlockSpec((tile_m, lane), lambda i, s: (i, 0))],
            out_specs=pl.BlockSpec((tile_m, lane), lambda i, s: (i, 0)))
        out2 = pl.pallas_call(
            kernel,
            out_shape=jax.ShapeDtypeStruct((rows, lane), before.dtype),
            grid_spec=grid_spec,
            compiler_params=compiler_params,
        )(jnp.array([seed], dtype=jnp.int32), b2, a2)
    else:
        # Host-side uint16 bits (interpret-mode safe); 2 B/elem instead of 4.
        threshold = min(int(round(p * 65536.0)), 65535)
        key = jax.random.PRNGKey(seed)
        bits = jax.random.bits(key, (rows, lane), dtype=jnp.uint16)
        kernel = functools.partial(_dropout_bits_kernel,
                                   threshold=threshold, scale=scale)
        spec = pl.BlockSpec((tile_m, lane), lambda i: (i, 0))
        out2 = pl.pallas_call(
            kernel,
            out_shape=jax.ShapeDtypeStruct((rows, lane), before.dtype),
            grid=grid,
            in_specs=[spec, spec, spec],
            out_specs=spec,
            compiler_params=compiler_params,
        )(b2, a2, bits)

    out_flat = out2.reshape(-1)
    if pad:
        out_flat = out_flat[:total]
    return out_flat.reshape(orig_shape)


if __name__ == "__main__":
    # Small shapes implied by the module: batch=2, seq=8, embedding_dim=32.
    key = jax.random.PRNGKey(0)
    kb, ka = jax.random.split(key)
    B, S, D = 2, 8, 32
    P = 0.1
    before = jax.random.normal(kb, (B, S, D), dtype=jnp.float32)
    after = jax.random.normal(ka, (B, S, D), dtype=jnp.float32)

    # Training mode (dropout active, deterministic seed).
    out_train = residual_block(before, after, residual_dropout=P,
                               training=True, seed=1234)
    jax.block_until_ready(out_train)
    assert out_train.shape == before.shape and out_train.dtype == before.dtype

    # Eval mode (identity dropout) — must equal before + after.
    out_eval = residual_block(before, after, residual_dropout=P,
                              training=False)
    jax.block_until_ready(out_eval)
    assert jnp.allclose(out_eval, before + after, atol=1e-6)

    # Sanity check on training output: every element is either
    # before + after/(1-p) (kept) or before (dropped).
    kept_val = before + after / (1.0 - P)
    dropped_val = before
    is_kept = jnp.isclose(out_train, kept_val, atol=1e-5)
    is_dropped = jnp.isclose(out_train, dropped_val, atol=1e-5)
    assert bool(jnp.all(is_kept | is_dropped))

    print("KERNEL_OK")
</pallas_src>

<mosaic_0001>
module attributes {stable_mosaic.version = 11 : i64} {
  func.func @_dropout_bits_kernel(%arg0: i32, %arg1: memref<1x512xf32, #tpu.memory_space<vmem>>, %arg2: memref<1x512xf32, #tpu.memory_space<vmem>>, %arg3: memref<1x512xi16, #tpu.memory_space<vmem>>, %arg4: memref<1x512xf32, #tpu.memory_space<vmem>>) attributes {dimension_semantics = [#tpu.dimension_semantics<parallel>], iteration_bounds = array<i64: 1>, scalar_prefetch = 0 : i64, scratch_operands = 0 : i64, tpu.core_type = #tpu.core_type<tc>, window_params = [{transform_indices = @transform_0, window_bounds = array<i64: 1, 512>}, {transform_indices = @transform_1, window_bounds = array<i64: 1, 512>}, {transform_indices = @transform_2, window_bounds = array<i64: 1, 512>}, {transform_indices = @transform_3, window_bounds = array<i64: 1, 512>}]} {
    %c0 = arith.constant 0 : index
    %c0_0 = arith.constant 0 : index
    %0 = vector.load %arg3[%c0, %c0_0] : memref<1x512xi16, #tpu.memory_space<vmem>>, vector<1x512xi16>
    %1 = arith.extui %0 : vector<1x512xi16> to vector<1x512xi32>
    %c6554_i32 = arith.constant 6554 : i32
    %2 = vector.broadcast %c6554_i32 : i32 to vector<1x512xi32>
    %3 = arith.cmpi sge, %1, %2 : vector<1x512xi32>
    %c0_1 = arith.constant 0 : index
    %c0_2 = arith.constant 0 : index
    %4 = vector.load %arg2[%c0_1, %c0_2] : memref<1x512xf32, #tpu.memory_space<vmem>>, vector<1x512xf32>
    %cst = arith.constant 1.11111116 : f32
    %5 = vector.broadcast %cst : f32 to vector<1x512xf32>
    %6 = arith.mulf %4, %5 : vector<1x512xf32>
    %cst_3 = arith.constant 0.000000e+00 : f32
    %7 = vector.broadcast %cst_3 : f32 to vector<1x512xf32>
    %8 = arith.select %3, %6, %7 : vector<1x512xi1>, vector<1x512xf32>
    %c0_4 = arith.constant 0 : index
    %c0_5 = arith.constant 0 : index
    %9 = vector.load %arg1[%c0_4, %c0_5] : memref<1x512xf32, #tpu.memory_space<vmem>>, vector<1x512xf32>
    %10 = arith.addf %9, %8 : vector<1x512xf32>
    %c0_6 = arith.constant 0 : index
    %c0_7 = arith.constant 0 : index
    %11 = vector.load %arg4[%c0_6, %c0_7] : memref<1x512xf32, #tpu.memory_space<vmem>>, vector<1x512xf32>
    tpu.vector_store %arg4[%c0_6, %c0_7], %10 {strides = array<i32>} : memref<1x512xf32, #tpu.memory_space<vmem>>, vector<1x512xf32>,
    return
  }
  func.func @transform_0(%arg0: i32) -> (i32, i32) {
    %c0_i32 = arith.constant 0 : i32
    %c0_i32_0 = arith.constant 0 : i32
    return %arg0, %c0_i32 : i32, i32
  }
  func.func @transform_1(%arg0: i32) -> (i32, i32) {
    %c0_i32 = arith.constant 0 : i32
    %c0_i32_0 = arith.constant 0 : i32
    return %arg0, %c0_i32 : i32, i32
  }
  func.func @transform_2(%arg0: i32) -> (i32, i32) {
    %c0_i32 = arith.constant 0 : i32
    %c0_i32_0 = arith.constant 0 : i32
    return %arg0, %c0_i32 : i32, i32
  }
  func.func @transform_3(%arg0: i32) -> (i32, i32) {
    %c0_i32 = arith.constant 0 : i32
    %c0_i32_0 = arith.constant 0 : i32
    return %arg0, %c0_i32 : i32, i32
  }
}

</mosaic_0001>

<llo_original>
// kernel: tpu_custom_call.1
$region0: #{tpu_custom_call.1}
  #allocation0 [shape = 'u32[]', space=smem, size = 0x4, offset = 0x4, fixed_abs, tag = 'smem constant byte address 0x4 - core index']
  #allocation1 [shape = 'u32[144,128]{1,0:T(1,128)}', space=vmem, size = 0x12000, scoped, tag = 'internal scratch']
  %s0 = inlined_call_operand.hbm [shape: f32[1,512], index: 0, kind: input, shape index: {}]
  %s1 = inlined_call_operand.hbm [shape: f32[1,512], index: 1, kind: input, shape index: {}]
  %s2 = inlined_call_operand.vmem [shape: u16[1,512], index: 2, kind: input, shape index: {}]
  %s3 = inlined_call_operand.hbm [shape: f32[1,512], index: 3, kind: output, shape index: {}]
  %s4 = sld [smem:[#allocation0]]
  $region30: #{tpu_custom_call.1} parent=0
    _
  %s6 = ssub.s32 1, %s4
  %s7 = scalar_select 0, %s6, %s4
  $region1: #{tpu_custom_call.1} parent=0
    #allocation2 [shape = 'u8[2048]{0}', space=vmem, size = 0x800, scoped, tag = 'input window, operand 0, single buffered']
    #allocation3 [shape = 's32[1]{0}', space=sflag, size = 0x4, scoped, tag = 'scoped memory for tpu_custom_call.1']
    #allocation4 [shape = 's32[1]{0}', space=sflag, size = 0x4, scoped, tag = 'scoped memory for tpu_custom_call.1']
    #allocation5 [shape = 'u8[2048]{0}', space=vmem, size = 0x800, scoped, tag = 'input window, operand 1, single buffered']
    #allocation6 [shape = 's32[1]{0}', space=sflag, size = 0x4, scoped, tag = 'scoped memory for tpu_custom_call.1']
    #allocation7 [shape = 'u8[2048]{0}', space=vmem, size = 0x800, scoped, tag = 'output window, operand 0, single buffered']
    %8 = vsyncpa [#allocation3], 0
    %9 = vsyncpa [#allocation6], 0
    %10 = vsyncpa [#allocation4], 0
    // Predicated region
    $region2: #{tpu_custom_call.1} parent=1 // pred_check
      _
    $region3: #{tpu_custom_call.1} parent=1 // pred_check_branch
      %12 = sbr.rel (0) target = $region5
    $region4: #{tpu_custom_call.1} parent=1 // pred_region
      %s14 = ssub.s32 64, 64
      %15 = vsyncadd [#allocation3], %s14
      %s17 = sshll.u32 [#allocation2], 4
      %s18 = int_to_ptr.vmem [resolvable:$true] %s17
      %20 = dma.hbm_to_vmem [thread:$0]  %s0, 64, %s18, [#allocation3]
    $region5: #{tpu_custom_call.1} parent=1 // pred_fallthru
      _
    // Predicated region
    $region6: #{tpu_custom_call.1} parent=1 // pred_check
      _
    $region7: #{tpu_custom_call.1} parent=1 // pred_check_branch
      %22 = sbr.rel (0) target = $region9
    $region8: #{tpu_custom_call.1} parent=1 // pred_region
      %s24 = ssub.s32 64, 64
      %25 = vsyncadd [#allocation6], %s24
      %s27 = sshll.u32 [#allocation5], 4
      %s28 = int_to_ptr.vmem [resolvable:$true] %s27
      %30 = dma.hbm_to_vmem [thread:$0]  %s1, 64, %s28, [#allocation6]
    $region9: #{tpu_custom_call.1} parent=1 // pred_fallthru
      _
    // Predicated region
    $region10: #{tpu_custom_call.1} parent=1 // pred_check
      _
    $region11: #{tpu_custom_call.1} parent=1 // pred_check_branch
      %32 = sbr.rel (0) target = $region13
    $region12: #{tpu_custom_call.1} parent=1 // pred_region
      _
    $region13: #{tpu_custom_call.1} parent=1 // pred_fallthru
      _
    // Predicated region
    $region14: #{tpu_custom_call.1} parent=1 // pred_check
      _
    $region15: #{tpu_custom_call.1} parent=1 // pred_check_branch
      %34 = sbr.rel (0) target = $region17
    $region16: #{tpu_custom_call.1} parent=1 // pred_region
      %35 = dma.done [#allocation3], 64
    $region17: #{tpu_custom_call.1} parent=1 // pred_fallthru
      _
    // Predicated region
    $region18: #{tpu_custom_call.1} parent=1 // pred_check
      _
    $region19: #{tpu_custom_call.1} parent=1 // pred_check_branch
      %37 = sbr.rel (0) target = $region21
    $region20: #{tpu_custom_call.1} parent=1 // pred_region
      %38 = dma.done [#allocation6], 64
    $region21: #{tpu_custom_call.1} parent=1 // pred_fallthru
      _
    %v39 = vld [vmem:[%s2] sm:$0xf]
    %v40 = vunpack.c.l.b16 %v39
    %v41 = vand.u32 %v40, 65535
    %vm42 = vcmp.ge.s32.totalorder %v41, 6554
    %v43 = vld [vmem:[#allocation5] sm:$0xf]
    %v44 = vmul.f32 %v43, 1.1111112
    %v47 = vunpack.c.l.s4 857870592
    %v48 = vunpack.c.0.s8 %v47
    %v49 = vlaneseq
    %v50 = vshrl.u32 %v49, 7
    %v51 = vsub.s32 %v48, %v50
    %v52 = vrot.slane %v44, %v51
    %v54 = vsel %vm42, %v52, 0.0
    %v55 = vld [vmem:[#allocation2] sm:$0xf]
    %v58 = vunpack.c.l.s4 1966171168
    %v59 = vunpack.c.0.s8 %v58
    %v60 = vlaneseq
    %v61 = vshrl.u32 %v60, 7
    %v62 = vsub.s32 %v59, %v61
    %v63 = vrot.slane %v54, %v62
    %v65 = vadd.f32 %v55, %v63
    %v66 = vlaneseq
    %vm67 = vcmp.ge.s32.totalorder %v66, 0
    %vm68 = vcmp.lt.s32.totalorder %v66, 512
    %vm69 = vmand %vm67, %vm68
    %70 = vst.msk [vmem:[#allocation7] sm:$0xf] %vm69, %v65
    // Predicated region
    $region22: #{tpu_custom_call.1} parent=1 // pred_check
      _
    $region23: #{tpu_custom_call.1} parent=1 // pred_check_branch
      %72 = sbr.rel (0) target = $region25
    $region24: #{tpu_custom_call.1} parent=1 // pred_region
      %s74 = ssub.s32 64, 64
      %75 = vsyncadd [#allocation4], %s74
      %s77 = sshll.u32 [#allocation7], 4
      %s78 = int_to_ptr.vmem [resolvable:$true] %s77
      %80 = dma.vmem_to_hbm [thread:$0]  %s78, 64, %s3, [#allocation4]
    $region25: #{tpu_custom_call.1} parent=1 // pred_fallthru
      _
    // Predicated region
    $region26: #{tpu_custom_call.1} parent=1 // pred_check
      _
    $region27: #{tpu_custom_call.1} parent=1 // pred_check_branch
      %82 = sbr.rel (0) target = $region29
    $region28: #{tpu_custom_call.1} parent=1 // pred_region
      %83 = dma.done [#allocation4], 64
    $region29: #{tpu_custom_call.1} parent=1 // pred_fallthru
      _
    %84 = vsyncpa [#allocation3], 1
    %85 = vsyncpa [#allocation6], 1
    %86 = vsyncpa [#allocation4], 1

</llo_original>
